<compile_context>
chip_gen: v6e
topology: v6e:2x2x1
jax: 0.10.0
libtpu: 0.0.40
codegen_flags: <defaults>
</compile_context>

<pallas_src>
import functools

import jax
import jax.numpy as jnp
from jax.experimental import pallas as pl
from jax.experimental.pallas import tpu as pltpu

_INV_SQRT2 = 0.7071067811865476  # 1/sqrt(2) as a multiply (cheaper than a divide)


def _gelu_exact(x):
    # PyTorch nn.GELU() default = exact erf-based GELU (kept for bit-level parity).
    return 0.5 * x * (1.0 + jax.lax.erf(x * jnp.float32(_INV_SQRT2)))


def prediction_head_kernel(x_ref, w1_ref, b1_ref, w2_ref, b2_ref, o_ref):
    # Pre-activation GELU on the input tile (f32 math, cast back to MXU dtype).
    gx = _gelu_exact(x_ref[...].astype(jnp.float32)).astype(w1_ref.dtype)

    # Linear(H -> 4H): native-dtype operands, f32 accumulation on the MXU.
    h = jnp.dot(gx, w1_ref[...], preferred_element_type=jnp.float32)
    h = _gelu_exact(h + b1_ref[...].astype(jnp.float32)).astype(w2_ref.dtype)

    # Linear(4H -> O_pad) + GELU (Dropout(p=0) is identity).
    y = jnp.dot(h, w2_ref[...], preferred_element_type=jnp.float32)
    y = _gelu_exact(y + b2_ref[...].astype(jnp.float32))

    o_ref[...] = y.astype(o_ref.dtype)


def _round_up(n, m):
    return ((n + m - 1) // m) * m


@functools.partial(jax.jit, static_argnames=("tb_max",))
def prediction_head(x, w1, b1, w2, b2, *, tb_max=256):
    """x: [B, H], w1: [H, 4H], b1: [1, 4H], w2: [4H, O], b2: [1, O] -> [B, O]."""
    B, H = x.shape
    H4 = w1.shape[1]
    O = w2.shape[1]

    # --- lane-dense output: pad output features to a multiple of 128 ---------------
    O_pad = _round_up(O, 128)
    if O_pad != O:
        w2 = jnp.pad(w2, ((0, 0), (0, O_pad - O)))
        b2 = jnp.pad(b2, ((0, 0), (0, O_pad - O)))

    # --- batch tiling: TB multiple of 8, pad B up to a multiple of TB ---------------
    TB = min(int(tb_max), _round_up(B, 8))
    B_pad = _round_up(B, TB)
    if B_pad != B:
        x = jnp.pad(x, ((0, B_pad - B), (0, 0)))

    grid = (B_pad // TB,)

    # Advisory cost estimate so XLA schedules neighbours around the custom call.
    itemsize = x.dtype.itemsize
    flops = 2 * B_pad * H * H4 + 2 * B_pad * H4 * O_pad
    transcendentals = B_pad * (H + H4 + O_pad)  # three erf-GELUs
    bytes_accessed = (
        x.size * itemsize
        + w1.size * w1.dtype.itemsize + b1.size * b1.dtype.itemsize
        + w2.size * w2.dtype.itemsize + b2.size * b2.dtype.itemsize
        + B_pad * O_pad * itemsize
    )

    out = pl.pallas_call(
        prediction_head_kernel,
        out_shape=jax.ShapeDtypeStruct((B_pad, O_pad), x.dtype),
        grid_spec=pltpu.PrefetchScalarGridSpec(
            num_scalar_prefetch=0,
            grid=grid,
            in_specs=[
                pl.BlockSpec((TB, H),     lambda i: (i, 0)),   # x tile (pipelined)
                pl.BlockSpec((H, H4),     lambda i: (0, 0)),   # W1 resident
                pl.BlockSpec((1, H4),     lambda i: (0, 0)),   # b1 resident
                pl.BlockSpec((H4, O_pad), lambda i: (0, 0)),   # W2 resident
                pl.BlockSpec((1, O_pad),  lambda i: (0, 0)),   # b2 resident
            ],
            out_specs=pl.BlockSpec((TB, O_pad), lambda i: (i, 0)),
        ),
        compiler_params=pltpu.CompilerParams(
            dimension_semantics=("parallel",),        # shard batch tiles across TCs (v7x)
            vmem_limit_bytes=48 * 1024 * 1024,        # under physical VMEM on v5e/v6e/v7x
        ),
        cost_estimate=pl.CostEstimate(
            flops=int(flops),
            transcendentals=int(transcendentals),
            bytes_accessed=int(bytes_accessed),
        ),
    )(x, w1, b1, w2, b2)

    return out[:B, :O]


def _torch_linear_init(key, fan_in, fan_out, dtype=jnp.float32):
    # deterministic stand-in for nn.Linear default init: U(-1/sqrt(fan_in), 1/sqrt(fan_in))
    kw, kb = jax.random.split(key)
    bound = 1.0 / jnp.sqrt(fan_in)
    w = jax.random.uniform(kw, (fan_in, fan_out), dtype, minval=-bound, maxval=bound)
    b = jax.random.uniform(kb, (1, fan_out), dtype, minval=-bound, maxval=bound)
    return w, b


if __name__ == "__main__":
    hidden_dim = 32
    output_dim = 8
    batch = 8

    key = jax.random.PRNGKey(0)
    kx, k1, k2 = jax.random.split(key, 3)

    x = jax.random.normal(kx, (batch, hidden_dim), jnp.float32)
    w1, b1 = _torch_linear_init(k1, hidden_dim, 4 * hidden_dim)
    w2, b2 = _torch_linear_init(k2, 4 * hidden_dim, output_dim)

    out = prediction_head(x, w1, b1, w2, b2)
    jax.block_until_ready(out)

    # pure-JAX reference check (exact erf GELU, Dropout(p=0) identity)
    def ref(x):
        g = lambda v: 0.5 * v * (1.0 + jax.lax.erf(v / jnp.sqrt(2.0)))
        h = g(g(x) @ w1 + b1)
        return g(h @ w2 + b2)

    assert out.shape == (batch, output_dim)
    assert jnp.allclose(out, ref(x), atol=1e-5, rtol=1e-5)

    print("KERNEL_OK")
</pallas_src>

<mosaic_0001>
module attributes {stable_mosaic.version = 11 : i64} {
  func.func @prediction_head_kernel(%arg0: i32, %arg1: memref<8x32xf32, #tpu.memory_space<vmem>>, %arg2: memref<32x128xf32, #tpu.memory_space<vmem>>, %arg3: memref<1x128xf32, #tpu.memory_space<vmem>>, %arg4: memref<128x128xf32, #tpu.memory_space<vmem>>, %arg5: memref<1x128xf32, #tpu.memory_space<vmem>>, %arg6: memref<8x128xf32, #tpu.memory_space<vmem>>) attributes {dimension_semantics = [#tpu.dimension_semantics<parallel>], iteration_bounds = array<i64: 1>, scalar_prefetch = 0 : i64, scratch_operands = 0 : i64, tpu.core_type = #tpu.core_type<tc>, window_params = [{transform_indices = @transform_0, window_bounds = array<i64: 8, 32>}, {pipeline_mode = #tpu.pipeline_mode<synchronous>, transform_indices = @transform_1, window_bounds = array<i64: 32, 128>}, {pipeline_mode = #tpu.pipeline_mode<synchronous>, transform_indices = @transform_2, window_bounds = array<i64: 1, 128>}, {pipeline_mode = #tpu.pipeline_mode<synchronous>, transform_indices = @transform_3, window_bounds = array<i64: 128, 128>}, {pipeline_mode = #tpu.pipeline_mode<synchronous>, transform_indices = @transform_4, window_bounds = array<i64: 1, 128>}, {transform_indices = @transform_5, window_bounds = array<i64: 8, 128>}]} {
    %c0 = arith.constant 0 : index
    %c0_0 = arith.constant 0 : index
    %0 = vector.load %arg1[%c0, %c0_0] : memref<8x32xf32, #tpu.memory_space<vmem>>, vector<8x32xf32>
    %cst = arith.constant 5.000000e-01 : f32
    %1 = vector.broadcast %cst : f32 to vector<8x32xf32>
    %2 = arith.mulf %1, %0 : vector<8x32xf32>
    %cst_1 = arith.constant 0.707106769 : f32
    %3 = vector.broadcast %cst_1 : f32 to vector<8x32xf32>
    %4 = arith.mulf %0, %3 : vector<8x32xf32>
    %5 = math.erf %4 : vector<8x32xf32>
    %cst_2 = arith.constant 1.000000e+00 : f32
    %6 = vector.broadcast %cst_2 : f32 to vector<8x32xf32>
    %7 = arith.addf %6, %5 : vector<8x32xf32>
    %8 = arith.mulf %2, %7 : vector<8x32xf32>
    %c0_3 = arith.constant 0 : index
    %c0_4 = arith.constant 0 : index
    %9 = vector.load %arg2[%c0_3, %c0_4] : memref<32x128xf32, #tpu.memory_space<vmem>>, vector<32x128xf32>
    %cst_5 = arith.constant dense<0.000000e+00> : vector<8x128xf32>
    %10 = tpu.matmul %8, %9, %cst_5 {dimension_numbers = #tpu.dot_dimension_numbers<[1], [0], [0], [1], [0, 0, 1, 1], [], []>} : vector<8x32xf32>, vector<32x128xf32>, vector<8x128xf32> -> vector<8x128xf32>
    %c0_6 = arith.constant 0 : index
    %c0_7 = arith.constant 0 : index
    %11 = vector.load %arg3[%c0_6, %c0_7] : memref<1x128xf32, #tpu.memory_space<vmem>>, vector<1x128xf32>
    %12 = vector.broadcast %11 : vector<1x128xf32> to vector<8x128xf32>
    %13 = arith.addf %10, %12 : vector<8x128xf32>
    %cst_8 = arith.constant 5.000000e-01 : f32
    %14 = vector.broadcast %cst_8 : f32 to vector<8x128xf32>
    %15 = arith.mulf %14, %13 : vector<8x128xf32>
    %cst_9 = arith.constant 0.707106769 : f32
    %16 = vector.broadcast %cst_9 : f32 to vector<8x128xf32>
    %17 = arith.mulf %13, %16 : vector<8x128xf32>
    %18 = math.erf %17 : vector<8x128xf32>
    %cst_10 = arith.constant 1.000000e+00 : f32
    %19 = vector.broadcast %cst_10 : f32 to vector<8x128xf32>
    %20 = arith.addf %19, %18 : vector<8x128xf32>
    %21 = arith.mulf %15, %20 : vector<8x128xf32>
    %c0_11 = arith.constant 0 : index
    %c0_12 = arith.constant 0 : index
    %22 = vector.load %arg4[%c0_11, %c0_12] : memref<128x128xf32, #tpu.memory_space<vmem>>, vector<128x128xf32>
    %cst_13 = arith.constant dense<0.000000e+00> : vector<8x128xf32>
    %23 = tpu.matmul %21, %22, %cst_13 {dimension_numbers = #tpu.dot_dimension_numbers<[1], [0], [0], [1], [0, 0, 1, 1], [], []>} : vector<8x128xf32>, vector<128x128xf32>, vector<8x128xf32> -> vector<8x128xf32>
    %c0_14 = arith.constant 0 : index
    %c0_15 = arith.constant 0 : index
    %24 = vector.load %arg5[%c0_14, %c0_15] : memref<1x128xf32, #tpu.memory_space<vmem>>, vector<1x128xf32>
    %25 = vector.broadcast %24 : vector<1x128xf32> to vector<8x128xf32>
    %26 = arith.addf %23, %25 : vector<8x128xf32>
    %cst_16 = arith.constant 5.000000e-01 : f32
    %27 = vector.broadcast %cst_16 : f32 to vector<8x128xf32>
    %28 = arith.mulf %27, %26 : vector<8x128xf32>
    %cst_17 = arith.constant 0.707106769 : f32
    %29 = vector.broadcast %cst_17 : f32 to vector<8x128xf32>
    %30 = arith.mulf %26, %29 : vector<8x128xf32>
    %31 = math.erf %30 : vector<8x128xf32>
    %cst_18 = arith.constant 1.000000e+00 : f32
    %32 = vector.broadcast %cst_18 : f32 to vector<8x128xf32>
    %33 = arith.addf %32, %31 : vector<8x128xf32>
    %34 = arith.mulf %28, %33 : vector<8x128xf32>
    %c0_19 = arith.constant 0 : index
    %c0_20 = arith.constant 0 : index
    %35 = vector.load %arg6[%c0_19, %c0_20] : memref<8x128xf32, #tpu.memory_space<vmem>>, vector<8x128xf32>
    tpu.vector_store %arg6[%c0_19, %c0_20], %34 {strides = array<i32>} : memref<8x128xf32, #tpu.memory_space<vmem>>, vector<8x128xf32>,
    return
  }
  func.func @transform_0(%arg0: i32) -> (i32, i32) {
    %c0_i32 = arith.constant 0 : i32
    %c0_i32_0 = arith.constant 0 : i32
    return %arg0, %c0_i32 : i32, i32
  }
  func.func @transform_1(%arg0: i32) -> (i32, i32) {
    %c0_i32 = arith.constant 0 : i32
    %c0_i32_0 = arith.constant 0 : i32
    %c0_i32_1 = arith.constant 0 : i32
    return %c0_i32, %c0_i32_0 : i32, i32
  }
  func.func @transform_2(%arg0: i32) -> (i32, i32) {
    %c0_i32 = arith.constant 0 : i32
    %c0_i32_0 = arith.constant 0 : i32
    %c0_i32_1 = arith.constant 0 : i32
    return %c0_i32, %c0_i32_0 : i32, i32
  }
  func.func @transform_3(%arg0: i32) -> (i32, i32) {
    %c0_i32 = arith.constant 0 : i32
    %c0_i32_0 = arith.constant 0 : i32
    %c0_i32_1 = arith.constant 0 : i32
    return %c0_i32, %c0_i32_0 : i32, i32
  }
  func.func @transform_4(%arg0: i32) -> (i32, i32) {
    %c0_i32 = arith.constant 0 : i32
    %c0_i32_0 = arith.constant 0 : i32
    %c0_i32_1 = arith.constant 0 : i32
    return %c0_i32, %c0_i32_0 : i32, i32
  }
  func.func @transform_5(%arg0: i32) -> (i32, i32) {
    %c0_i32 = arith.constant 0 : i32
    %c0_i32_0 = arith.constant 0 : i32
    return %arg0, %c0_i32 : i32, i32
  }
}

</mosaic_0001>

<llo_original>
// kernel: prediction_head.1
$region0: #{prediction_head.1}
  #allocation0 [shape = 'u32[]', space=smem, size = 0x4, offset = 0x4, fixed_abs, tag = 'smem constant byte address 0x4 - core index']
  #allocation1 [shape = 'u32[144,128]{1,0:T(1,128)}', space=vmem, size = 0x12000, scoped, tag = 'internal scratch']
  %s0 = inlined_call_operand.vmem [shape: f32[8,32], index: 0, kind: input, shape index: {}]
  %s1 = inlined_call_operand.vmem [shape: f32[32,128], index: 1, kind: input, shape index: {}]
  %s2 = inlined_call_operand.vmem [shape: f32[1,128], index: 2, kind: input, shape index: {}]
  %s3 = inlined_call_operand.vmem [shape: f32[128,128], index: 3, kind: input, shape index: {}]
  %s4 = inlined_call_operand.vmem [shape: f32[1,128], index: 4, kind: input, shape index: {}]
  %s5 = inlined_call_operand.hbm [shape: f32[8,128], index: 5, kind: output, shape index: {}]
  %s6 = sld [smem:[#allocation0]]
  $region30: #{prediction_head.1} parent=0
    _
  %s8 = ssub.s32 1, %s6
  %s9 = scalar_select 0, %s8, %s6
  $region1: #{prediction_head.1} parent=0
    #allocation2 [shape = 'u8[4096]{0}', space=vmem, size = 0x1000, scoped, tag = 'output window, operand 0, single buffered']
    #allocation3 [shape = 's32[1]{0}', space=sflag, size = 0x4, scoped, tag = 'scoped memory for prediction_head.1']
    %10 = vsyncpa [#allocation3], 0
    // Predicated region
    $region2: #{prediction_head.1} parent=1 // pred_check
      _
    $region3: #{prediction_head.1} parent=1 // pred_check_branch
      %12 = sbr.rel (0) target = $region5
    $region4: #{prediction_head.1} parent=1 // pred_region
      _
    $region5: #{prediction_head.1} parent=1 // pred_fallthru
      _
    // Predicated region
    $region6: #{prediction_head.1} parent=1 // pred_check
      _
    $region7: #{prediction_head.1} parent=1 // pred_check_branch
      %14 = sbr.rel (0) target = $region9
    $region8: #{prediction_head.1} parent=1 // pred_region
      _
    $region9: #{prediction_head.1} parent=1 // pred_fallthru
      _
    // Predicated region
    $region10: #{prediction_head.1} parent=1 // pred_check
      _
    $region11: #{prediction_head.1} parent=1 // pred_check_branch
      %16 = sbr.rel (0) target = $region13
    $region12: #{prediction_head.1} parent=1 // pred_region
      _
    $region13: #{prediction_head.1} parent=1 // pred_fallthru
      _
    // Predicated region
    $region14: #{prediction_head.1} parent=1 // pred_check
      _
    $region15: #{prediction_head.1} parent=1 // pred_check_branch
      %18 = sbr.rel (0) target = $region17
    $region16: #{prediction_head.1} parent=1 // pred_region
      _
    $region17: #{prediction_head.1} parent=1 // pred_fallthru
      _
    // Predicated region
    $region18: #{prediction_head.1} parent=1 // pred_check
      _
    $region19: #{prediction_head.1} parent=1 // pred_check_branch
      %20 = sbr.rel (0) target = $region21
    $region20: #{prediction_head.1} parent=1 // pred_region
      _
    $region21: #{prediction_head.1} parent=1 // pred_fallthru
      _
    %v21 = vld [vmem:[%s0] sm:$0xff]
    %v22 = vmul.f32 %v21, 0.5
    %v23 = vmul.f32 %v21, 0.70710677
    %v24 = verf.f32.pop %v23
    %v25 = vadd.f32 %v24, 1.0
    %v26 = vmul.f32 %v22, %v25
    %v27 = vld [vmem:[%s1] sm:$0xff]
    %v28 = vld [vmem:[%s1 + $0x8] sm:$0xff]
    %v29 = vld [vmem:[%s1 + $0x10] sm:$0xff]
    %v30 = vld [vmem:[%s1 + $0x18] sm:$0xff]
    %v31 = vld [vmem:[%s2] sm:$0x1]
    %v33 = vlaneseq
    %v34 = vshrl.u32 %v33, 7
    %v35 = vsub.s32 0, %v34
    %v36 = vrot.slane %v31, %v35
    %vm38 = vcmask 261120
    %v40 = vsel %vm38, %v26, 0
    %42 = vmatprep.subr.mxu0 0.0
    %43 = vmatpush1.msra.mxu0 0.0
    %44 = vmatprep.subr.mxu0 0.0
    %45 = vmatpush1.msra.mxu0 0.0
    %46 = vmatprep.subr.mxu0 0.0
    %47 = vmatpush1.msra.mxu0 0.0
    %48 = vmatprep.subr.mxu0 0.0
    %49 = vmatpush1.msra.mxu0 0.0
    %50 = vmatprep.subr.mxu0 0.0
    %51 = vmatpush1.msra.mxu0 0.0
    %52 = vmatprep.subr.mxu0 0.0
    %53 = vmatpush1.msra.mxu0 0.0
    %54 = vmatprep.subr.mxu0 0.0
    %55 = vmatpush1.msra.mxu0 0.0
    %56 = vmatprep.subr.mxu0 0.0
    %57 = vmatpush1.msra.mxu0 0.0
    %58 = vmatprep.subr.mxu0 0.0
    %59 = vmatpush1.msra.mxu0 0.0
    %60 = vmatprep.subr.mxu0 0.0
    %61 = vmatpush1.msra.mxu0 0.0
    %62 = vmatprep.subr.mxu0 0.0
    %63 = vmatpush1.msra.mxu0 0.0
    %64 = vmatprep.subr.mxu0 0.0
    %65 = vmatpush1.msra.mxu0 0.0
    %66 = vmatprep.subr.mxu0 0.0
    %67 = vmatpush1.msra.mxu0 %v30
    %68 = vmatprep.subr.mxu0 0.0
    %69 = vmatpush1.msra.mxu0 %v29
    %70 = vmatprep.subr.mxu0 0.0
    %71 = vmatpush1.msra.mxu0 %v28
    %72 = vmatprep.subr.mxu0 0.0
    %73 = vmatpush1.msra.mxu0 %v27
    %74 = vmatprep.subr.mxu0 0.0
    %75 = vmatpush2.msra.mxu0 0.0
    %76 = vmatprep.subr.mxu0 0.0
    %77 = vmatpush2.msra.mxu0 0.0
    %78 = vmatprep.subr.mxu0 0.0
    %79 = vmatpush2.msra.mxu0 0.0
    %80 = vmatprep.subr.mxu0 0.0
    %81 = vmatpush2.msra.mxu0 0.0
    %82 = vmatprep.subr.mxu0 0.0
    %83 = vmatpush2.msra.mxu0 0.0
    %84 = vmatprep.subr.mxu0 0.0
    %85 = vmatpush2.msra.mxu0 0.0
    %86 = vmatprep.subr.mxu0 0.0
    %87 = vmatpush2.msra.mxu0 0.0
    %88 = vmatprep.subr.mxu0 0.0
    %89 = vmatpush2.msra.mxu0 0.0
    %90 = vmatprep.subr.mxu0 0.0
    %91 = vmatpush2.msra.mxu0 0.0
    %92 = vmatprep.subr.mxu0 0.0
    %93 = vmatpush2.msra.mxu0 0.0
    %94 = vmatprep.subr.mxu0 0.0
    %95 = vmatpush2.msra.mxu0 0.0
    %96 = vmatprep.subr.mxu0 0.0
    %97 = vmatpush2.msra.mxu0 0.0
    %98 = vmatprep.subr.mxu0 0.0
    %99 = vmatpush2.msra.mxu0 0.0
    %100 = vmatprep.subr.mxu0 0.0
    %101 = vmatpush2.msra.mxu0 0.0
    %102 = vmatprep.subr.mxu0 0.0
    %103 = vmatpush2.msra.mxu0 0.0
    %104 = vmatprep.subr.mxu0 0.0
    %105 = vmatpush2.msra.mxu0 0.0
    %106 = vmatprep.mubr.f32.mxu0 0.0
    %107 = vmatmul.mubr.f32.gmra.mxu0 %v40
    %v108 = vpop.f32.mrf.mxu0
    %v109 = vadd.f32 %v36, %v108
    %v110 = vpop.f32.mrf.mxu0
    %111 = vdwg.mxu0
    %v112 = vmul.f32 %v109, 0.5
    %v113 = vmul.f32 %v109, 0.70710677
    %v114 = verf.f32.pop %v113
    %v115 = vadd.f32 %v114, 1.0
    %v116 = vmul.f32 %v112, %v115
    %v117 = vld [vmem:[%s3] sm:$0xff]
    %v118 = vld [vmem:[%s3 + $0x8] sm:$0xff]
    %v119 = vld [vmem:[%s3 + $0x10] sm:$0xff]
    %v120 = vld [vmem:[%s3 + $0x18] sm:$0xff]
    %v121 = vld [vmem:[%s3 + $0x20] sm:$0xff]
    %v122 = vld [vmem:[%s3 + $0x28] sm:$0xff]
    %v123 = vld [vmem:[%s3 + $0x30] sm:$0xff]
    %v124 = vld [vmem:[%s3 + $0x38] sm:$0xff]
    %v125 = vld [vmem:[%s3 + $0x40] sm:$0xff]
    %v126 = vld [vmem:[%s3 + $0x48] sm:$0xff]
    %v127 = vld [vmem:[%s3 + $0x50] sm:$0xff]
    %v128 = vld [vmem:[%s3 + $0x58] sm:$0xff]
    %v129 = vld [vmem:[%s3 + $0x60] sm:$0xff]
    %v130 = vld [vmem:[%s3 + $0x68] sm:$0xff]
    %v131 = vld [vmem:[%s3 + $0x70] sm:$0xff]
    %v132 = vld [vmem:[%s3 + $0x78] sm:$0xff]
    %v133 = vld [vmem:[%s4] sm:$0x1]
    %v135 = vlaneseq
    %v136 = vshrl.u32 %v135, 7
    %v137 = vsub.s32 0, %v136
    %v138 = vrot.slane %v133, %v137
    %140 = vmatprep.subr.mxu0 0.0
    %141 = vmatpush1.msra.mxu0 %v132
    %142 = vmatprep.subr.mxu0 0.0
    %143 = vmatpush1.msra.mxu0 %v131
    %144 = vmatprep.subr.mxu0 0.0
    %145 = vmatpush1.msra.mxu0 %v130
    %146 = vmatprep.subr.mxu0 0.0
    %147 = vmatpush1.msra.mxu0 %v129
    %148 = vmatprep.subr.mxu0 0.0
    %149 = vmatpush1.msra.mxu0 %v128
    %150 = vmatprep.subr.mxu0 0.0
    %151 = vmatpush1.msra.mxu0 %v127
    %152 = vmatprep.subr.mxu0 0.0
    %153 = vmatpush1.msra.mxu0 %v126
    %154 = vmatprep.subr.mxu0 0.0
    %155 = vmatpush1.msra.mxu0 %v125
    %156 = vmatprep.subr.mxu0 0.0
    %157 = vmatpush1.msra.mxu0 %v124
    %158 = vmatprep.subr.mxu0 0.0
    %159 = vmatpush1.msra.mxu0 %v123
    %160 = vmatprep.subr.mxu0 0.0
    %161 = vmatpush1.msra.mxu0 %v122
    %162 = vmatprep.subr.mxu0 0.0
    %163 = vmatpush1.msra.mxu0 %v121
    %164 = vmatprep.subr.mxu0 0.0
    %165 = vmatpush1.msra.mxu0 %v120
    %166 = vmatprep.subr.mxu0 0.0
    %167 = vmatpush1.msra.mxu0 %v119
    %168 = vmatprep.subr.mxu0 0.0
    %169 = vmatpush1.msra.mxu0 %v118
    %170 = vmatprep.subr.mxu0 0.0
    %171 = vmatpush1.msra.mxu0 %v117
    %172 = vmatprep.subr.mxu0 0.0
    %173 = vmatpush2.msra.mxu0 0.0
    %174 = vmatprep.subr.mxu0 0.0
    %175 = vmatpush2.msra.mxu0 0.0
    %176 = vmatprep.subr.mxu0 0.0
    %177 = vmatpush2.msra.mxu0 0.0
    %178 = vmatprep.subr.mxu0 0.0
    %179 = vmatpush2.msra.mxu0 0.0
    %180 = vmatprep.subr.mxu0 0.0
    %181 = vmatpush2.msra.mxu0 0.0
    %182 = vmatprep.subr.mxu0 0.0
    %183 = vmatpush2.msra.mxu0 0.0
    %184 = vmatprep.subr.mxu0 0.0
    %185 = vmatpush2.msra.mxu0 0.0
    %186 = vmatprep.subr.mxu0 0.0
    %187 = vmatpush2.msra.mxu0 0.0
    %188 = vmatprep.subr.mxu0 0.0
    %189 = vmatpush2.msra.mxu0 0.0
    %190 = vmatprep.subr.mxu0 0.0
    %191 = vmatpush2.msra.mxu0 0.0
    %192 = vmatprep.subr.mxu0 0.0
    %193 = vmatpush2.msra.mxu0 0.0
    %194 = vmatprep.subr.mxu0 0.0
    %195 = vmatpush2.msra.mxu0 0.0
    %196 = vmatprep.subr.mxu0 0.0
    %197 = vmatpush2.msra.mxu0 0.0
    %198 = vmatprep.subr.mxu0 0.0
    %199 = vmatpush2.msra.mxu0 0.0
    %200 = vmatprep.subr.mxu0 0.0
    %201 = vmatpush2.msra.mxu0 0.0
    %202 = vmatprep.subr.mxu0 0.0
    %203 = vmatpush2.msra.mxu0 0.0
    %204 = vmatprep.mubr.f32.mxu0 0.0
    %205 = vmatmul.mubr.f32.gmra.mxu0 %v116
    %v206 = vpop.f32.mrf.mxu0
    %v207 = vadd.f32 %v138, %v206
    %v208 = vpop.f32.mrf.mxu0
    %209 = vdwg.mxu0
    %v210 = vmul.f32 %v207, 0.5
    %v211 = vmul.f32 %v207, 0.70710677
    %v212 = verf.f32.pop %v211
    %v213 = vadd.f32 %v212, 1.0
    %v214 = vmul.f32 %v210, %v213
    %215 = vst [vmem:[#allocation2] sm:$0xff] %v214
    // Predicated region
    $region22: #{prediction_head.1} parent=1 // pred_check
      _
    $region23: #{prediction_head.1} parent=1 // pred_check_branch
      %217 = sbr.rel (0) target = $region25
    $region24: #{prediction_head.1} parent=1 // pred_region
      %s219 = ssub.s32 128, 128
      %220 = vsyncadd [#allocation3], %s219
      %s222 = sshll.u32 [#allocation2], 4
      %s223 = int_to_ptr.vmem [resolvable:$true] %s222
      %225 = dma.vmem_to_hbm [thread:$0]  %s223, 128, %s5, [#allocation3]
    $region25: #{prediction_head.1} parent=1 // pred_fallthru
      _
    // Predicated region
    $region26: #{prediction_head.1} parent=1 // pred_check
      _
    $region27: #{prediction_head.1} parent=1 // pred_check_branch
      %227 = sbr.rel (0) target = $region29
    $region28: #{prediction_head.1} parent=1 // pred_region
      %228 = dma.done [#allocation3], 128
    $region29: #{prediction_head.1} parent=1 // pred_fallthru
      _
    %229 = vsyncpa [#allocation3], 1

</llo_original>
